<compile_context>
chip_gen: v7x
topology: tpu7x:2x2x1
jax: 0.10.0
libtpu: 0.0.40
codegen_flags: <defaults>
</compile_context>

<pallas_src>
import functools

import jax
import jax.numpy as jnp
from jax.experimental import pallas as pl
from jax.experimental.pallas import tpu as pltpu


def _round_up(n: int, m: int) -> int:
    return ((n + m - 1) // m) * m


def mlp_kernel(x_ref, w1_ref, b1_ref, w2_ref, b2_ref, o_ref, *, use_bf16):
    x = x_ref[...]
    w1 = w1_ref[...]
    w2 = w2_ref[...]
    if use_bf16:
        # bf16 operands into the MXU (v6e/v7x peak path), f32 accumulation.
        x = x.astype(jnp.bfloat16)
        w1 = w1.astype(jnp.bfloat16)
        w2 = w2.astype(jnp.bfloat16)

    # Hidden layer: x @ W1 + b1, ReLU. Bias/ReLU epilogue kept in f32 (required on v5e,
    # cheap everywhere). b1 is a (1, Hp) row broadcast over the batch tile.
    h = jnp.dot(x, w1, preferred_element_type=jnp.float32)
    h = jnp.maximum(h + b1_ref[...], 0.0)
    # Dropout with p=0.0 is the identity (module default); nothing to do.

    if use_bf16:
        h = h.astype(jnp.bfloat16)

    # Output layer: h @ W2 + b2 (f32 accumulation + f32 bias add).
    out = jnp.dot(h, w2, preferred_element_type=jnp.float32) + b2_ref[...]
    o_ref[...] = out.astype(o_ref.dtype)


def mlp_forward(x, w1, b1, w2, b2, *, use_bf16=False):
    """Fused MLP forward. x: [B, F], w1: [F, H], b1: [H]/[1,H], w2: [H, L], b2: [L]/[1,L]."""
    B, F = x.shape
    H = w1.shape[1]
    L = w2.shape[1]
    b1 = b1.reshape(1, H)
    b2 = b2.reshape(1, L)

    # Pad lane dims to multiples of 128 (lane-dense compute and unmasked stores),
    # batch to a multiple of 8 (sublane).
    Fp = _round_up(F, 128)
    Hp = _round_up(H, 128)
    Lp = _round_up(L, 128)
    Bp = _round_up(B, 8)

    x_p = jnp.pad(x, ((0, Bp - B), (0, Fp - F)))
    w1_p = jnp.pad(w1, ((0, Fp - F), (0, Hp - H)))
    b1_p = jnp.pad(b1, ((0, 0), (0, Hp - H)))
    w2_p = jnp.pad(w2, ((0, Hp - H), (0, Lp - L)))
    b2_p = jnp.pad(b2, ((0, 0), (0, Lp - L)))

    # Batch tiling: single step for small batches (no per-step pipeline overhead);
    # 128-row tiles once batch is large -> >=2 parallel steps so v7x can use both TCs.
    if Bp <= 128:
        batch_tile = Bp
    else:
        batch_tile = 128
        Bp = _round_up(Bp, batch_tile)
        x_p = jnp.pad(x_p, ((0, Bp - x_p.shape[0]), (0, 0)))
    grid = (Bp // batch_tile,)

    kernel = functools.partial(mlp_kernel, use_bf16=use_bf16)

    out_p = pl.pallas_call(
        kernel,
        out_shape=jax.ShapeDtypeStruct((Bp, Lp), x.dtype),
        grid_spec=pl.GridSpec(
            grid=grid,
            in_specs=[
                pl.BlockSpec((batch_tile, Fp), lambda i: (i, 0)),  # x tile
                pl.BlockSpec((Fp, Hp), lambda i: (0, 0)),          # W1 (resident)
                pl.BlockSpec((1, Hp), lambda i: (0, 0)),           # b1
                pl.BlockSpec((Hp, Lp), lambda i: (0, 0)),          # W2 (resident)
                pl.BlockSpec((1, Lp), lambda i: (0, 0)),           # b2
            ],
            out_specs=pl.BlockSpec((batch_tile, Lp), lambda i: (i, 0)),
        ),
        compiler_params=pltpu.CompilerParams(
            dimension_semantics=("parallel",),
        ),
    )(x_p, w1_p, b1_p, w2_p, b2_p)

    # Slice padded batch rows / output lanes back to the logical shape.
    return out_p[:B, :L]


def init_mlp_params(key, num_features, hidden_layer_size, num_labels):
    """Deterministic init matching torch.nn.Linear's U(-1/sqrt(fan_in), 1/sqrt(fan_in))."""
    k1, k2, k3, k4 = jax.random.split(key, 4)
    bound1 = 1.0 / jnp.sqrt(num_features)
    bound2 = 1.0 / jnp.sqrt(hidden_layer_size)
    w1 = jax.random.uniform(k1, (num_features, hidden_layer_size),
                            jnp.float32, -bound1, bound1)
    b1 = jax.random.uniform(k2, (1, hidden_layer_size),
                            jnp.float32, -bound1, bound1)
    w2 = jax.random.uniform(k3, (hidden_layer_size, num_labels),
                            jnp.float32, -bound2, bound2)
    b2 = jax.random.uniform(k4, (1, num_labels),
                            jnp.float32, -bound2, bound2)
    return w1, b1, w2, b2


if __name__ == "__main__":
    # Shapes implied by the module: src is [batch, num_features],
    # hidden_layer_size default 300, output is [batch, num_labels].
    batch = 16
    num_features = 32
    hidden_layer_size = 300
    num_labels = 8

    key = jax.random.PRNGKey(0)
    kx, kp = jax.random.split(key)
    x = jax.random.normal(kx, (batch, num_features), dtype=jnp.float32)
    w1, b1, w2, b2 = init_mlp_params(kp, num_features, hidden_layer_size, num_labels)

    out = mlp_forward(x, w1, b1, w2, b2)
    out = jax.block_until_ready(out)

    # Pure-JAX reference check of the forward semantics (dropout p=0.0 -> identity).
    ref = jnp.maximum(x @ w1 + b1, 0.0) @ w2 + b2
    assert out.shape == (batch, num_labels)
    assert jnp.allclose(out, ref, atol=1e-5, rtol=1e-5)

    print("KERNEL_OK")
</pallas_src>

<mosaic_0001>
module attributes {stable_mosaic.version = 11 : i64} {
  func.func @mlp_kernel(%arg0: i32, %arg1: memref<16x128xf32, #tpu.memory_space<vmem>>, %arg2: memref<128x384xf32, #tpu.memory_space<vmem>>, %arg3: memref<1x384xf32, #tpu.memory_space<vmem>>, %arg4: memref<384x128xf32, #tpu.memory_space<vmem>>, %arg5: memref<1x128xf32, #tpu.memory_space<vmem>>, %arg6: memref<16x128xf32, #tpu.memory_space<vmem>>) attributes {dimension_semantics = [#tpu.dimension_semantics<parallel>], iteration_bounds = array<i64: 1>, scalar_prefetch = 0 : i64, scratch_operands = 0 : i64, tpu.core_type = #tpu.core_type<tc>, window_params = [{transform_indices = @transform_0, window_bounds = array<i64: 16, 128>}, {pipeline_mode = #tpu.pipeline_mode<synchronous>, transform_indices = @transform_1, window_bounds = array<i64: 128, 384>}, {pipeline_mode = #tpu.pipeline_mode<synchronous>, transform_indices = @transform_2, window_bounds = array<i64: 1, 384>}, {pipeline_mode = #tpu.pipeline_mode<synchronous>, transform_indices = @transform_3, window_bounds = array<i64: 384, 128>}, {pipeline_mode = #tpu.pipeline_mode<synchronous>, transform_indices = @transform_4, window_bounds = array<i64: 1, 128>}, {transform_indices = @transform_5, window_bounds = array<i64: 16, 128>}]} {
    %c0 = arith.constant 0 : index
    %c0_0 = arith.constant 0 : index
    %0 = vector.load %arg1[%c0, %c0_0] : memref<16x128xf32, #tpu.memory_space<vmem>>, vector<16x128xf32>
    %c0_1 = arith.constant 0 : index
    %c0_2 = arith.constant 0 : index
    %1 = vector.load %arg2[%c0_1, %c0_2] : memref<128x384xf32, #tpu.memory_space<vmem>>, vector<128x384xf32>
    %c0_3 = arith.constant 0 : index
    %c0_4 = arith.constant 0 : index
    %2 = vector.load %arg4[%c0_3, %c0_4] : memref<384x128xf32, #tpu.memory_space<vmem>>, vector<384x128xf32>
    %cst = arith.constant dense<0.000000e+00> : vector<16x384xf32>
    %3 = tpu.matmul %0, %1, %cst {dimension_numbers = #tpu.dot_dimension_numbers<[1], [0], [0], [1], [0, 0, 1, 1], [], []>} : vector<16x128xf32>, vector<128x384xf32>, vector<16x384xf32> -> vector<16x384xf32>
    %c0_5 = arith.constant 0 : index
    %c0_6 = arith.constant 0 : index
    %4 = vector.load %arg3[%c0_5, %c0_6] : memref<1x384xf32, #tpu.memory_space<vmem>>, vector<1x384xf32>
    %5 = vector.broadcast %4 : vector<1x384xf32> to vector<16x384xf32>
    %6 = arith.addf %3, %5 : vector<16x384xf32>
    %cst_7 = arith.constant 0.000000e+00 : f32
    %7 = vector.broadcast %cst_7 : f32 to vector<16x384xf32>
    %8 = arith.maximumf %6, %7 : vector<16x384xf32>
    %cst_8 = arith.constant dense<0.000000e+00> : vector<16x128xf32>
    %9 = tpu.matmul %8, %2, %cst_8 {dimension_numbers = #tpu.dot_dimension_numbers<[1], [0], [0], [1], [0, 0, 1, 1], [], []>} : vector<16x384xf32>, vector<384x128xf32>, vector<16x128xf32> -> vector<16x128xf32>
    %c0_9 = arith.constant 0 : index
    %c0_10 = arith.constant 0 : index
    %10 = vector.load %arg5[%c0_9, %c0_10] : memref<1x128xf32, #tpu.memory_space<vmem>>, vector<1x128xf32>
    %11 = vector.broadcast %10 : vector<1x128xf32> to vector<16x128xf32>
    %12 = arith.addf %9, %11 : vector<16x128xf32>
    %c0_11 = arith.constant 0 : index
    %c0_12 = arith.constant 0 : index
    %13 = vector.load %arg6[%c0_11, %c0_12] : memref<16x128xf32, #tpu.memory_space<vmem>>, vector<16x128xf32>
    tpu.vector_store %arg6[%c0_11, %c0_12], %12 {strides = array<i32>} : memref<16x128xf32, #tpu.memory_space<vmem>>, vector<16x128xf32>,
    return
  }
  func.func @transform_0(%arg0: i32) -> (i32, i32) {
    %c0_i32 = arith.constant 0 : i32
    %c0_i32_0 = arith.constant 0 : i32
    return %arg0, %c0_i32 : i32, i32
  }
  func.func @transform_1(%arg0: i32) -> (i32, i32) {
    %c0_i32 = arith.constant 0 : i32
    %c0_i32_0 = arith.constant 0 : i32
    %c0_i32_1 = arith.constant 0 : i32
    return %c0_i32, %c0_i32_0 : i32, i32
  }
  func.func @transform_2(%arg0: i32) -> (i32, i32) {
    %c0_i32 = arith.constant 0 : i32
    %c0_i32_0 = arith.constant 0 : i32
    %c0_i32_1 = arith.constant 0 : i32
    return %c0_i32, %c0_i32_0 : i32, i32
  }
  func.func @transform_3(%arg0: i32) -> (i32, i32) {
    %c0_i32 = arith.constant 0 : i32
    %c0_i32_0 = arith.constant 0 : i32
    %c0_i32_1 = arith.constant 0 : i32
    return %c0_i32, %c0_i32_0 : i32, i32
  }
  func.func @transform_4(%arg0: i32) -> (i32, i32) {
    %c0_i32 = arith.constant 0 : i32
    %c0_i32_0 = arith.constant 0 : i32
    %c0_i32_1 = arith.constant 0 : i32
    return %c0_i32, %c0_i32_0 : i32, i32
  }
  func.func @transform_5(%arg0: i32) -> (i32, i32) {
    %c0_i32 = arith.constant 0 : i32
    %c0_i32_0 = arith.constant 0 : i32
    return %arg0, %c0_i32 : i32, i32
  }
}

</mosaic_0001>

<llo_original>
// kernel: tpu_custom_call.1
$region0: #{tpu_custom_call.1}
  #allocation0 [shape = 'u32[]', space=smem, size = 0x4, offset = 0x4, fixed_abs, tag = 'smem constant byte address 0x4 - core index']
  #allocation1 [shape = 'u32[144,128]{1,0:T(1,128)}', space=vmem, size = 0x12000, scoped, tag = 'internal scratch']
  %s0 = inlined_call_operand.hbm [shape: f32[16,128], index: 0, kind: input, shape index: {}]
  %s1 = inlined_call_operand.hbm [shape: f32[128,384], index: 1, kind: input, shape index: {}]
  %s2 = inlined_call_operand.vmem [shape: f32[1,384], index: 2, kind: input, shape index: {}]
  %s3 = inlined_call_operand.hbm [shape: f32[384,128], index: 3, kind: input, shape index: {}]
  %s4 = inlined_call_operand.vmem [shape: f32[1,128], index: 4, kind: input, shape index: {}]
  %s5 = inlined_call_operand.hbm [shape: f32[16,128], index: 5, kind: output, shape index: {}]
  %s6 = sld [smem:[#allocation0]]
  $region42: #{tpu_custom_call.1} parent=0
    _
  %s8 = ssub.s32 1, %s6
  %s9 = scalar_select 0, %s8, %s6
  $region1: #{tpu_custom_call.1} parent=0
    #allocation2 [shape = 'u8[8192]{0}', space=vmem, size = 0x2000, scoped, tag = 'input window, operand 0, single buffered']
    #allocation3 [shape = 's32[1]{0}', space=sflag, size = 0x4, scoped, tag = 'scoped memory for tpu_custom_call.1']
    #allocation4 [shape = 's32[1]{0}', space=sflag, size = 0x4, scoped, tag = 'scoped memory for tpu_custom_call.1']
    #allocation5 [shape = 'u8[196608]{0}', space=vmem, size = 0x30000, scoped, tag = 'input window, operand 1, single buffered']
    #allocation6 [shape = 's32[1]{0}', space=sflag, size = 0x4, scoped, tag = 'scoped memory for tpu_custom_call.1']
    #allocation7 [shape = 'u8[196608]{0}', space=vmem, size = 0x30000, scoped, tag = 'input window, operand 3, single buffered']
    #allocation8 [shape = 'u8[8192]{0}', space=vmem, size = 0x2000, scoped, tag = 'output window, operand 0, single buffered']
    %10 = vsyncpa [#allocation3], 0
    %11 = vsyncpa [#allocation6], 0
    %12 = vsyncpa [#allocation4], 0
    // Predicated region
    $region2: #{tpu_custom_call.1} parent=1 // pred_check
      _
    $region3: #{tpu_custom_call.1} parent=1 // pred_check_branch
      %14 = sbr.rel (0) target = $region5
    $region4: #{tpu_custom_call.1} parent=1 // pred_region
      %s16 = ssub.s32 256, 256
      %17 = vsyncadd [#allocation3], %s16
      %s18 = sshll.u32 [#allocation2], 4
      %s19 = int_to_ptr.vmem [resolvable:$true] %s18
      %24 = dma.hbm_to_vmem [thread:$0]  %s0, 256, %s19, [#allocation3], 128, 128, 8
    $region5: #{tpu_custom_call.1} parent=1 // pred_fallthru
      _
    // Predicated region
    $region6: #{tpu_custom_call.1} parent=1 // pred_check
      _
    $region7: #{tpu_custom_call.1} parent=1 // pred_check_branch
      %26 = sbr.rel (0) target = $region9
    $region8: #{tpu_custom_call.1} parent=1 // pred_region
      %s28 = ssub.s32 6144, 6144
      %29 = vsyncadd [#allocation6], %s28
      %s30 = sshll.u32 [#allocation5], 4
      %s31 = int_to_ptr.vmem [resolvable:$true] %s30
      %36 = dma.hbm_to_vmem [thread:$0]  %s1, 6144, %s31, [#allocation6], 384, 384, 24
    $region9: #{tpu_custom_call.1} parent=1 // pred_fallthru
      _
    // Predicated region
    $region10: #{tpu_custom_call.1} parent=1 // pred_check
      _
    $region11: #{tpu_custom_call.1} parent=1 // pred_check_branch
      %38 = sbr.rel (0) target = $region13
    $region12: #{tpu_custom_call.1} parent=1 // pred_region
      _
    $region13: #{tpu_custom_call.1} parent=1 // pred_fallthru
      _
    // Predicated region
    $region14: #{tpu_custom_call.1} parent=1 // pred_check
      _
    $region15: #{tpu_custom_call.1} parent=1 // pred_check_branch
      %40 = sbr.rel (0) target = $region17
    $region16: #{tpu_custom_call.1} parent=1 // pred_region
      %s42 = ssub.s32 6144, 6144
      %43 = vsyncadd [#allocation6], %s42
      %s44 = sshll.u32 [#allocation7], 4
      %s45 = int_to_ptr.vmem [resolvable:$true] %s44
      %50 = dma.hbm_to_vmem [thread:$0]  %s3, 6144, %s45, [#allocation6], 128, 128, 8
    $region17: #{tpu_custom_call.1} parent=1 // pred_fallthru
      _
    // Predicated region
    $region18: #{tpu_custom_call.1} parent=1 // pred_check
      _
    $region19: #{tpu_custom_call.1} parent=1 // pred_check_branch
      %52 = sbr.rel (0) target = $region21
    $region20: #{tpu_custom_call.1} parent=1 // pred_region
      _
    $region21: #{tpu_custom_call.1} parent=1 // pred_fallthru
      _
    // Predicated region
    $region22: #{tpu_custom_call.1} parent=1 // pred_check
      _
    $region23: #{tpu_custom_call.1} parent=1 // pred_check_branch
      %54 = sbr.rel (0) target = $region25
    $region24: #{tpu_custom_call.1} parent=1 // pred_region
      %55 = dma.done [#allocation3], 256
    $region25: #{tpu_custom_call.1} parent=1 // pred_fallthru
      _
    // Predicated region
    $region26: #{tpu_custom_call.1} parent=1 // pred_check
      _
    $region27: #{tpu_custom_call.1} parent=1 // pred_check_branch
      %57 = sbr.rel (0) target = $region29
    $region28: #{tpu_custom_call.1} parent=1 // pred_region
      %58 = dma.done [#allocation6], 6144
    $region29: #{tpu_custom_call.1} parent=1 // pred_fallthru
      _
    // Predicated region
    $region30: #{tpu_custom_call.1} parent=1 // pred_check
      _
    $region31: #{tpu_custom_call.1} parent=1 // pred_check_branch
      %60 = sbr.rel (0) target = $region33
    $region32: #{tpu_custom_call.1} parent=1 // pred_region
      %61 = dma.done [#allocation6], 6144
    $region33: #{tpu_custom_call.1} parent=1 // pred_fallthru
      _
    %v62 = vld [vmem:[#allocation2] sm:$0xff]
    %v63 = vld [vmem:[#allocation2 + $0x8] sm:$0xff]
    %v64 = vld [vmem:[#allocation5] sm:$0xff]
    %v65 = vld [vmem:[#allocation5 + $0x8] sm:$0xff]
    %v66 = vld [vmem:[#allocation5 + $0x10] sm:$0xff]
    %v67 = vld [vmem:[#allocation5 + $0x18] sm:$0xff]
    %v68 = vld [vmem:[#allocation5 + $0x20] sm:$0xff]
    %v69 = vld [vmem:[#allocation5 + $0x28] sm:$0xff]
    %v70 = vld [vmem:[#allocation5 + $0x30] sm:$0xff]
    %v71 = vld [vmem:[#allocation5 + $0x38] sm:$0xff]
    %v72 = vld [vmem:[#allocation5 + $0x40] sm:$0xff]
    %v73 = vld [vmem:[#allocation5 + $0x48] sm:$0xff]
    %v74 = vld [vmem:[#allocation5 + $0x50] sm:$0xff]
    %v75 = vld [vmem:[#allocation5 + $0x58] sm:$0xff]
    %v76 = vld [vmem:[#allocation5 + $0x60] sm:$0xff]
    %v77 = vld [vmem:[#allocation5 + $0x68] sm:$0xff]
    %v78 = vld [vmem:[#allocation5 + $0x70] sm:$0xff]
    %v79 = vld [vmem:[#allocation5 + $0x78] sm:$0xff]
    %v80 = vld [vmem:[#allocation5 + $0x80] sm:$0xff]
    %v81 = vld [vmem:[#allocation5 + $0x88] sm:$0xff]
    %v82 = vld [vmem:[#allocation5 + $0x90] sm:$0xff]
    %v83 = vld [vmem:[#allocation5 + $0x98] sm:$0xff]
    %v84 = vld [vmem:[#allocation5 + $0xa0] sm:$0xff]
    %v85 = vld [vmem:[#allocation5 + $0xa8] sm:$0xff]
    %v86 = vld [vmem:[#allocation5 + $0xb0] sm:$0xff]
    %v87 = vld [vmem:[#allocation5 + $0xb8] sm:$0xff]
    %v88 = vld [vmem:[#allocation5 + $0xc0] sm:$0xff]
    %v89 = vld [vmem:[#allocation5 + $0xc8] sm:$0xff]
    %v90 = vld [vmem:[#allocation5 + $0xd0] sm:$0xff]
    %v91 = vld [vmem:[#allocation5 + $0xd8] sm:$0xff]
    %v92 = vld [vmem:[#allocation5 + $0xe0] sm:$0xff]
    %v93 = vld [vmem:[#allocation5 + $0xe8] sm:$0xff]
    %v94 = vld [vmem:[#allocation5 + $0xf0] sm:$0xff]
    %v95 = vld [vmem:[#allocation5 + $0xf8] sm:$0xff]
    %v96 = vld [vmem:[#allocation5 + $0x100] sm:$0xff]
    %v97 = vld [vmem:[#allocation5 + $0x108] sm:$0xff]
    %v98 = vld [vmem:[#allocation5 + $0x110] sm:$0xff]
    %v99 = vld [vmem:[#allocation5 + $0x118] sm:$0xff]
    %v100 = vld [vmem:[#allocation5 + $0x120] sm:$0xff]
    %v101 = vld [vmem:[#allocation5 + $0x128] sm:$0xff]
    %v102 = vld [vmem:[#allocation5 + $0x130] sm:$0xff]
    %v103 = vld [vmem:[#allocation5 + $0x138] sm:$0xff]
    %v104 = vld [vmem:[#allocation5 + $0x140] sm:$0xff]
    %v105 = vld [vmem:[#allocation5 + $0x148] sm:$0xff]
    %v106 = vld [vmem:[#allocation5 + $0x150] sm:$0xff]
    %v107 = vld [vmem:[#allocation5 + $0x158] sm:$0xff]
    %v108 = vld [vmem:[#allocation5 + $0x160] sm:$0xff]
    %v109 = vld [vmem:[#allocation5 + $0x168] sm:$0xff]
    %v110 = vld [vmem:[#allocation5 + $0x170] sm:$0xff]
    %v111 = vld [vmem:[#allocation5 + $0x178] sm:$0xff]
    %v112 = vld [vmem:[#allocation7] sm:$0xff]
    %v113 = vld [vmem:[#allocation7 + $0x8] sm:$0xff]
    %v114 = vld [vmem:[#allocation7 + $0x10] sm:$0xff]
    %v115 = vld [vmem:[#allocation7 + $0x18] sm:$0xff]
    %v116 = vld [vmem:[#allocation7 + $0x20] sm:$0xff]
    %v117 = vld [vmem:[#allocation7 + $0x28] sm:$0xff]
    %v118 = vld [vmem:[#allocation7 + $0x30] sm:$0xff]
    %v119 = vld [vmem:[#allocation7 + $0x38] sm:$0xff]
    %v120 = vld [vmem:[#allocation7 + $0x40] sm:$0xff]
    %v121 = vld [vmem:[#allocation7 + $0x48] sm:$0xff]
    %v122 = vld [vmem:[#allocation7 + $0x50] sm:$0xff]
    %v123 = vld [vmem:[#allocation7 + $0x58] sm:$0xff]
    %v124 = vld [vmem:[#allocation7 + $0x60] sm:$0xff]
    %v125 = vld [vmem:[#allocation7 + $0x68] sm:$0xff]
    %v126 = vld [vmem:[#allocation7 + $0x70] sm:$0xff]
    %v127 = vld [vmem:[#allocation7 + $0x78] sm:$0xff]
    %v128 = vld [vmem:[#allocation7 + $0x80] sm:$0xff]
    %v129 = vld [vmem:[#allocation7 + $0x88] sm:$0xff]
    %v130 = vld [vmem:[#allocation7 + $0x90] sm:$0xff]
    %v131 = vld [vmem:[#allocation7 + $0x98] sm:$0xff]
    %v132 = vld [vmem:[#allocation7 + $0xa0] sm:$0xff]
    %v133 = vld [vmem:[#allocation7 + $0xa8] sm:$0xff]
    %v134 = vld [vmem:[#allocation7 + $0xb0] sm:$0xff]
    %v135 = vld [vmem:[#allocation7 + $0xb8] sm:$0xff]
    %v136 = vld [vmem:[#allocation7 + $0xc0] sm:$0xff]
    %v137 = vld [vmem:[#allocation7 + $0xc8] sm:$0xff]
    %v138 = vld [vmem:[#allocation7 + $0xd0] sm:$0xff]
    %v139 = vld [vmem:[#allocation7 + $0xd8] sm:$0xff]
    %v140 = vld [vmem:[#allocation7 + $0xe0] sm:$0xff]
    %v141 = vld [vmem:[#allocation7 + $0xe8] sm:$0xff]
    %v142 = vld [vmem:[#allocation7 + $0xf0] sm:$0xff]
    %v143 = vld [vmem:[#allocation7 + $0xf8] sm:$0xff]
    %v144 = vld [vmem:[#allocation7 + $0x100] sm:$0xff]
    %v145 = vld [vmem:[#allocation7 + $0x108] sm:$0xff]
    %v146 = vld [vmem:[#allocation7 + $0x110] sm:$0xff]
    %v147 = vld [vmem:[#allocation7 + $0x118] sm:$0xff]
    %v148 = vld [vmem:[#allocation7 + $0x120] sm:$0xff]
    %v149 = vld [vmem:[#allocation7 + $0x128] sm:$0xff]
    %v150 = vld [vmem:[#allocation7 + $0x130] sm:$0xff]
    %v151 = vld [vmem:[#allocation7 + $0x138] sm:$0xff]
    %v152 = vld [vmem:[#allocation7 + $0x140] sm:$0xff]
    %v153 = vld [vmem:[#allocation7 + $0x148] sm:$0xff]
    %v154 = vld [vmem:[#allocation7 + $0x150] sm:$0xff]
    %v155 = vld [vmem:[#allocation7 + $0x158] sm:$0xff]
    %v156 = vld [vmem:[#allocation7 + $0x160] sm:$0xff]
    %v157 = vld [vmem:[#allocation7 + $0x168] sm:$0xff]
    %v158 = vld [vmem:[#allocation7 + $0x170] sm:$0xff]
    %v159 = vld [vmem:[#allocation7 + $0x178] sm:$0xff]
    %v160 = vld [vmem:[%s2] sm:$0x7]
    %v162 = vlaneseq
    %v163 = vshrl.u32 %v162, 7
    %v164 = vsub.s32 0, %v163
    %v165 = vrot.slane %v160, %v164
    %v166 = vlaneseq
    %v167 = vshrl.u32 %v166, 7
    %v168 = vsub.s32 1, %v167
    %v169 = vrot.slane %v160, %v168
    %v170 = vlaneseq
    %v171 = vshrl.u32 %v170, 7
    %v172 = vsub.s32 2, %v171
    %v173 = vrot.slane %v160, %v172
    %177 = vmatprep.subr.mxu0 %v65
    %178 = vmatpush1.msra.mxu0 %v64
    %179 = vmatprep.subr.mxu0 %v68
    %180 = vmatpush1.msra.mxu0 %v67
    %181 = vmatprep.subr.mxu0 %v71
    %182 = vmatpush1.msra.mxu0 %v70
    %183 = vmatprep.subr.mxu0 %v74
    %184 = vmatpush1.msra.mxu0 %v73
    %185 = vmatprep.subr.mxu0 %v77
    %186 = vmatpush1.msra.mxu0 %v76
    %187 = vmatprep.subr.mxu0 %v80
    %188 = vmatpush1.msra.mxu0 %v79
    %189 = vmatprep.subr.mxu0 %v83
    %190 = vmatpush1.msra.mxu0 %v82
    %191 = vmatprep.subr.mxu0 %v86
    %192 = vmatpush1.msra.mxu0 %v85
    %193 = vmatprep.subr.mxu0 %v89
    %194 = vmatpush1.msra.mxu0 %v88
    %195 = vmatprep.subr.mxu0 %v92
    %196 = vmatpush1.msra.mxu0 %v91
    %197 = vmatprep.subr.mxu0 %v95
    %198 = vmatpush1.msra.mxu0 %v94
    %199 = vmatprep.subr.mxu0 %v98
    %200 = vmatpush1.msra.mxu0 %v97
    %201 = vmatprep.subr.mxu0 %v101
    %202 = vmatpush1.msra.mxu0 %v100
    %203 = vmatprep.subr.mxu0 %v104
    %204 = vmatpush1.msra.mxu0 %v103
    %205 = vmatprep.subr.mxu0 %v107
    %206 = vmatpush1.msra.mxu0 %v106
    %207 = vmatprep.subr.mxu0 %v110
    %208 = vmatpush1.msra.mxu0 %v109
    %209 = vmatprep.subr.mxu0 0.0
    %210 = vmatpush1.msra.mxu0 0.0
    %211 = vmatprep.subr.mxu0 0.0
    %212 = vmatpush1.msra.mxu0 0.0
    %213 = vmatprep.subr.mxu0 0.0
    %214 = vmatpush1.msra.mxu0 0.0
    %215 = vmatprep.subr.mxu0 0.0
    %216 = vmatpush1.msra.mxu0 0.0
    %217 = vmatprep.subr.mxu0 0.0
    %218 = vmatpush1.msra.mxu0 0.0
    %219 = vmatprep.subr.mxu0 0.0
    %220 = vmatpush1.msra.mxu0 0.0
    %221 = vmatprep.subr.mxu0 0.0
    %222 = vmatpush1.msra.mxu0 0.0
    %223 = vmatprep.subr.mxu0 0.0
    %224 = vmatpush1.msra.mxu0 0.0
    %225 = vmatprep.subr.mxu0 0.0
    %226 = vmatpush1.msra.mxu0 0.0
    %227 = vmatprep.subr.mxu0 0.0
    %228 = vmatpush1.msra.mxu0 0.0
    %229 = vmatprep.subr.mxu0 0.0
    %230 = vmatpush1.msra.mxu0 0.0
    %231 = vmatprep.subr.mxu0 0.0
    %232 = vmatpush1.msra.mxu0 0.0
    %233 = vmatprep.subr.mxu0 0.0
    %234 = vmatpush1.msra.mxu0 0.0
    %235 = vmatprep.subr.mxu0 0.0
    %236 = vmatpush1.msra.mxu0 0.0
    %237 = vmatprep.subr.mxu0 0.0
    %238 = vmatpush1.msra.mxu0 0.0
    %239 = vmatprep.subr.mxu0 0.0
    %240 = vmatpush1.msra.mxu0 0.0
    %241 = vmatprep.mubr.f32.mxu0 0.0
    %242 = vmatmul.mubr.f32.gmra.mrb[0].mxu0 %v62
    %v243 = vpop.f32.mrb[0].mxu0
    %v244 = vadd.f32 %v165, %v243
    %v245 = vpop.f32.mrb[0].mxu0
    %v246 = vadd.f32 %v169, %v245
    %247 = vmatprep.mubr.f32.mxu0 0.0
    %248 = vmatmul.mubr.f32.gmra.mrb[0].mxu0 %v63
    %v249 = vpop.f32.mrb[0].mxu0
    %v250 = vadd.f32 %v165, %v249
    %v251 = vpop.f32.mrb[0].mxu0
    %v252 = vadd.f32 %v169, %v251
    %253 = vdwg.mxu0
    %254 = vmatprep.subr.mxu0 0.0
    %255 = vmatpush1.msra.mxu0 %v66
    %256 = vmatprep.subr.mxu0 0.0
    %257 = vmatpush1.msra.mxu0 %v69
    %258 = vmatprep.subr.mxu0 0.0
    %259 = vmatpush1.msra.mxu0 %v72
    %260 = vmatprep.subr.mxu0 0.0
    %261 = vmatpush1.msra.mxu0 %v75
    %262 = vmatprep.subr.mxu0 0.0
    %263 = vmatpush1.msra.mxu0 %v78
    %264 = vmatprep.subr.mxu0 0.0
    %265 = vmatpush1.msra.mxu0 %v81
    %266 = vmatprep.subr.mxu0 0.0
    %267 = vmatpush1.msra.mxu0 %v84
    %268 = vmatprep.subr.mxu0 0.0
    %269 = vmatpush1.msra.mxu0 %v87
    %270 = vmatprep.subr.mxu0 0.0
    %271 = vmatpush1.msra.mxu0 %v90
    %272 = vmatprep.subr.mxu0 0.0
    %273 = vmatpush1.msra.mxu0 %v93
    %274 = vmatprep.subr.mxu0 0.0
    %275 = vmatpush1.msra.mxu0 %v96
    %276 = vmatprep.subr.mxu0 0.0
    %277 = vmatpush1.msra.mxu0 %v99
    %278 = vmatprep.subr.mxu0 0.0
    %279 = vmatpush1.msra.mxu0 %v102
    %280 = vmatprep.subr.mxu0 0.0
    %281 = vmatpush1.msra.mxu0 %v105
    %282 = vmatprep.subr.mxu0 0.0
    %283 = vmatpush1.msra.mxu0 %v108
    %284 = vmatprep.subr.mxu0 0.0
    %285 = vmatpush1.msra.mxu0 %v111
    %286 = vmatprep.subr.mxu0 0.0
    %287 = vmatpush1.msra.mxu0 0.0
    %288 = vmatprep.subr.mxu0 0.0
    %289 = vmatpush1.msra.mxu0 0.0
    %290 = vmatprep.subr.mxu0 0.0
    %291 = vmatpush1.msra.mxu0 0.0
    %292 = vmatprep.subr.mxu0 0.0
    %293 = vmatpush1.msra.mxu0 0.0
    %294 = vmatprep.subr.mxu0 0.0
    %295 = vmatpush1.msra.mxu0 0.0
    %296 = vmatprep.subr.mxu0 0.0
    %297 = vmatpush1.msra.mxu0 0.0
    %298 = vmatprep.subr.mxu0 0.0
    %299 = vmatpush1.msra.mxu0 0.0
    %300 = vmatprep.subr.mxu0 0.0
    %301 = vmatpush1.msra.mxu0 0.0
    %302 = vmatprep.subr.mxu0 0.0
    %303 = vmatpush1.msra.mxu0 0.0
    %304 = vmatprep.subr.mxu0 0.0
    %305 = vmatpush1.msra.mxu0 0.0
    %306 = vmatprep.subr.mxu0 0.0
    %307 = vmatpush1.msra.mxu0 0.0
    %308 = vmatprep.subr.mxu0 0.0
    %309 = vmatpush1.msra.mxu0 0.0
    %310 = vmatprep.subr.mxu0 0.0
    %311 = vmatpush1.msra.mxu0 0.0
    %312 = vmatprep.subr.mxu0 0.0
    %313 = vmatpush1.msra.mxu0 0.0
    %314 = vmatprep.subr.mxu0 0.0
    %315 = vmatpush1.msra.mxu0 0.0
    %316 = vmatprep.subr.mxu0 0.0
    %317 = vmatpush1.msra.mxu0 0.0
    %318 = vmatprep.mubr.f32.mxu0 0.0
    %319 = vmatmul.mubr.f32.gmra.mrb[0].mxu0 %v62
    %v320 = vpop.f32.mrb[0].mxu0
    %v321 = vadd.f32 %v173, %v320
    %v322 = vpop.f32.mrb[0].mxu0
    %323 = vmatprep.mubr.f32.mxu0 0.0
    %324 = vmatmul.mubr.f32.gmra.mrb[0].mxu0 %v63
    %v325 = vpop.f32.mrb[0].mxu0
    %v326 = vadd.f32 %v173, %v325
    %v327 = vpop.f32.mrb[0].mxu0
    %328 = vdwg.mxu0
    %v329 = vmax.f32 %v244, 0.0
    %v330 = vmax.f32 %v246, 0.0
    %v331 = vmax.f32 %v321, 0.0
    %v332 = vmax.f32 %v250, 0.0
    %v333 = vmax.f32 %v252, 0.0
    %v334 = vmax.f32 %v326, 0.0
    %v335 = vld [vmem:[%s4] sm:$0x1]
    %v337 = vlaneseq
    %v338 = vshrl.u32 %v337, 7
    %v339 = vsub.s32 0, %v338
    %v340 = vrot.slane %v335, %v339
    %342 = vmatprep.subr.mxu0 0.0
    %343 = vmatpush1.msra.mxu0 %v112
    %344 = vmatprep.subr.mxu0 0.0
    %345 = vmatpush1.msra.mxu0 %v113
    %346 = vmatprep.subr.mxu0 0.0
    %347 = vmatpush1.msra.mxu0 %v114
    %348 = vmatprep.subr.mxu0 0.0
    %349 = vmatpush1.msra.mxu0 %v115
    %350 = vmatprep.subr.mxu0 0.0
    %351 = vmatpush1.msra.mxu0 %v116
    %352 = vmatprep.subr.mxu0 0.0
    %353 = vmatpush1.msra.mxu0 %v117
    %354 = vmatprep.subr.mxu0 0.0
    %355 = vmatpush1.msra.mxu0 %v118
    %356 = vmatprep.subr.mxu0 0.0
    %357 = vmatpush1.msra.mxu0 %v119
    %358 = vmatprep.subr.mxu0 0.0
    %359 = vmatpush1.msra.mxu0 %v120
    %360 = vmatprep.subr.mxu0 0.0
    %361 = vmatpush1.msra.mxu0 %v121
    %362 = vmatprep.subr.mxu0 0.0
    %363 = vmatpush1.msra.mxu0 %v122
    %364 = vmatprep.subr.mxu0 0.0
    %365 = vmatpush1.msra.mxu0 %v123
    %366 = vmatprep.subr.mxu0 0.0
    %367 = vmatpush1.msra.mxu0 %v124
    %368 = vmatprep.subr.mxu0 0.0
    %369 = vmatpush1.msra.mxu0 %v125
    %370 = vmatprep.subr.mxu0 0.0
    %371 = vmatpush1.msra.mxu0 %v126
    %372 = vmatprep.subr.mxu0 0.0
    %373 = vmatpush1.msra.mxu0 %v127
    %374 = vmatprep.subr.mxu0 0.0
    %375 = vmatpush1.msra.mxu0 %v128
    %376 = vmatprep.subr.mxu0 0.0
    %377 = vmatpush1.msra.mxu0 %v129
    %378 = vmatprep.subr.mxu0 0.0
    %379 = vmatpush1.msra.mxu0 %v130
    %380 = vmatprep.subr.mxu0 0.0
    %381 = vmatpush1.msra.mxu0 %v131
    %382 = vmatprep.subr.mxu0 0.0
    %383 = vmatpush1.msra.mxu0 %v132
    %384 = vmatprep.subr.mxu0 0.0
    %385 = vmatpush1.msra.mxu0 %v133
    %386 = vmatprep.subr.mxu0 0.0
    %387 = vmatpush1.msra.mxu0 %v134
    %388 = vmatprep.subr.mxu0 0.0
    %389 = vmatpush1.msra.mxu0 %v135
    %390 = vmatprep.subr.mxu0 0.0
    %391 = vmatpush1.msra.mxu0 %v136
    %392 = vmatprep.subr.mxu0 0.0
    %393 = vmatpush1.msra.mxu0 %v137
    %394 = vmatprep.subr.mxu0 0.0
    %395 = vmatpush1.msra.mxu0 %v138
    %396 = vmatprep.subr.mxu0 0.0
    %397 = vmatpush1.msra.mxu0 %v139
    %398 = vmatprep.subr.mxu0 0.0
    %399 = vmatpush1.msra.mxu0 %v140
    %400 = vmatprep.subr.mxu0 0.0
    %401 = vmatpush1.msra.mxu0 %v141
    %402 = vmatprep.subr.mxu0 0.0
    %403 = vmatpush1.msra.mxu0 %v142
    %404 = vmatprep.subr.mxu0 0.0
    %405 = vmatpush1.msra.mxu0 %v143
    %406 = vmatprep.mubr.f32.mxu0 %v330
    %407 = vmatmul.mubr.f32.gmra.mrb[0].mxu0 %v329
    %v408 = vpop.f32.mrb[0].mxu0
    %v409 = vadd.f32 %v340, %v408
    %v410 = vpop.f32.mrb[0].mxu0
    %411 = vmatprep.mubr.f32.mxu0 %v333
    %412 = vmatmul.mubr.f32.gmra.mrb[0].mxu0 %v332
    %v413 = vpop.f32.mrb[0].mxu0
    %v414 = vadd.f32 %v340, %v413
    %v415 = vpop.f32.mrb[0].mxu0
    %416 = vdwg.mxu0
    %417 = vmatprep.subr.mxu0 0.0
    %418 = vmatpush1.msra.mxu0 %v144
    %419 = vmatprep.subr.mxu0 0.0
    %420 = vmatpush1.msra.mxu0 %v145
    %421 = vmatprep.subr.mxu0 0.0
    %422 = vmatpush1.msra.mxu0 %v146
    %423 = vmatprep.subr.mxu0 0.0
    %424 = vmatpush1.msra.mxu0 %v147
    %425 = vmatprep.subr.mxu0 0.0
    %426 = vmatpush1.msra.mxu0 %v148
    %427 = vmatprep.subr.mxu0 0.0
    %428 = vmatpush1.msra.mxu0 %v149
    %429 = vmatprep.subr.mxu0 0.0
    %430 = vmatpush1.msra.mxu0 %v150
    %431 = vmatprep.subr.mxu0 0.0
    %432 = vmatpush1.msra.mxu0 %v151
    %433 = vmatprep.subr.mxu0 0.0
    %434 = vmatpush1.msra.mxu0 %v152
    %435 = vmatprep.subr.mxu0 0.0
    %436 = vmatpush1.msra.mxu0 %v153
    %437 = vmatprep.subr.mxu0 0.0
    %438 = vmatpush1.msra.mxu0 %v154
    %439 = vmatprep.subr.mxu0 0.0
    %440 = vmatpush1.msra.mxu0 %v155
    %441 = vmatprep.subr.mxu0 0.0
    %442 = vmatpush1.msra.mxu0 %v156
    %443 = vmatprep.subr.mxu0 0.0
    %444 = vmatpush1.msra.mxu0 %v157
    %445 = vmatprep.subr.mxu0 0.0
    %446 = vmatpush1.msra.mxu0 %v158
    %447 = vmatprep.subr.mxu0 0.0
    %448 = vmatpush1.msra.mxu0 %v159
    %449 = vmatprep.subr.mxu0 0.0
    %450 = vmatpush1.msra.mxu0 0.0
    %451 = vmatprep.subr.mxu0 0.0
    %452 = vmatpush1.msra.mxu0 0.0
    %453 = vmatprep.subr.mxu0 0.0
    %454 = vmatpush1.msra.mxu0 0.0
    %455 = vmatprep.subr.mxu0 0.0
    %456 = vmatpush1.msra.mxu0 0.0
    %457 = vmatprep.subr.mxu0 0.0
    %458 = vmatpush1.msra.mxu0 0.0
    %459 = vmatprep.subr.mxu0 0.0
    %460 = vmatpush1.msra.mxu0 0.0
    %461 = vmatprep.subr.mxu0 0.0
    %462 = vmatpush1.msra.mxu0 0.0
    %463 = vmatprep.subr.mxu0 0.0
    %464 = vmatpush1.msra.mxu0 0.0
    %465 = vmatprep.subr.mxu0 0.0
    %466 = vmatpush1.msra.mxu0 0.0
    %467 = vmatprep.subr.mxu0 0.0
    %468 = vmatpush1.msra.mxu0 0.0
    %469 = vmatprep.subr.mxu0 0.0
    %470 = vmatpush1.msra.mxu0 0.0
    %471 = vmatprep.subr.mxu0 0.0
    %472 = vmatpush1.msra.mxu0 0.0
    %473 = vmatprep.subr.mxu0 0.0
    %474 = vmatpush1.msra.mxu0 0.0
    %475 = vmatprep.subr.mxu0 0.0
    %476 = vmatpush1.msra.mxu0 0.0
    %477 = vmatprep.subr.mxu0 0.0
    %478 = vmatpush1.msra.mxu0 0.0
    %479 = vmatprep.subr.mxu0 0.0
    %480 = vmatpush1.msra.mxu0 0.0
    %481 = vmatprep.mubr.f32.mxu0 0.0
    %482 = vmatmul.mubr.f32.gmra.mrb[0].mxu0 %v331
    %v483 = vpop.f32.mrb[0].mxu0
    %v484 = vadd.f32 %v409, %v483
    %v485 = vpop.f32.mrb[0].mxu0
    %486 = vmatprep.mubr.f32.mxu0 0.0
    %487 = vmatmul.mubr.f32.gmra.mrb[0].mxu0 %v334
    %v488 = vpop.f32.mrb[0].mxu0
    %v489 = vadd.f32 %v414, %v488
    %v490 = vpop.f32.mrb[0].mxu0
    %491 = vdwg.mxu0
    %492 = vst [vmem:[#allocation8] sm:$0xff] %v484
    %493 = vst [vmem:[#allocation8 + $0x8] sm:$0xff] %v489
    // Predicated region
    $region34: #{tpu_custom_call.1} parent=1 // pred_check
      _
    $region35: #{tpu_custom_call.1} parent=1 // pred_check_branch
      %495 = sbr.rel (0) target = $region37
    $region36: #{tpu_custom_call.1} parent=1 // pred_region
      %s497 = ssub.s32 256, 256
      %498 = vsyncadd [#allocation4], %s497
      %s499 = sshll.u32 [#allocation8], 4
      %s500 = int_to_ptr.vmem [resolvable:$true] %s499
      %505 = dma.vmem_to_hbm [thread:$0]  %s500, 256, %s5, [#allocation4], 128, 128, 8
    $region37: #{tpu_custom_call.1} parent=1 // pred_fallthru
      _
    // Predicated region
    $region38: #{tpu_custom_call.1} parent=1 // pred_check
      _
    $region39: #{tpu_custom_call.1} parent=1 // pred_check_branch
      %507 = sbr.rel (0) target = $region41
    $region40: #{tpu_custom_call.1} parent=1 // pred_region
      %508 = dma.done [#allocation4], 256
    $region41: #{tpu_custom_call.1} parent=1 // pred_fallthru
      _
    %509 = vsyncpa [#allocation3], 1
    %510 = vsyncpa [#allocation6], 1
    %511 = vsyncpa [#allocation4], 1

</llo_original>
